<compile_context>
chip_gen: v7x
topology: tpu7x:2x2x1
jax: 0.10.0
libtpu: 0.0.40
codegen_flags: <defaults>
</compile_context>

<pallas_src>
import functools

import jax
import jax.numpy as jnp
from jax.experimental import pallas as pl
from jax.experimental.pallas import tpu as pltpu


# ----------------------------------------------------------------------------
# Plain-JAX glue: FPS, ball query, grouping (data-dependent gathers).
# ----------------------------------------------------------------------------
def farthest_point_sample(xyz, num_centroids):
    # xyz: (B, 3, N) -> (B, num_centroids) int32 (starts from point 0, like CUDA op)
    pts = jnp.transpose(xyz, (0, 2, 1))  # (B, N, 3)
    B, N, _ = pts.shape

    def step(carry, _):
        dist, last_idx = carry
        last_pt = jnp.take_along_axis(pts, last_idx[:, None, None], axis=1)  # (B,1,3)
        d = jnp.sum((pts - last_pt) ** 2, axis=-1)  # (B, N)
        dist = jnp.minimum(dist, d)
        nxt = jnp.argmax(dist, axis=-1).astype(jnp.int32)
        return (dist, nxt), last_idx

    init = (jnp.full((B, N), 1e10, dtype=pts.dtype), jnp.zeros((B,), jnp.int32))
    (_, _), idxs = jax.lax.scan(step, init, None, length=num_centroids)
    return jnp.transpose(idxs, (1, 0))  # (B, S)


def batch_index_select(x, index):
    # x: (B, C, N), index: (B, S) -> (B, C, S)
    return jax.vmap(lambda xb, ib: xb[:, ib])(x, index)


def ball_query(new_xyz, xyz, radius, max_neighbors):
    # new_xyz: (B,3,S), xyz: (B,3,N) -> (B,S,K) int32.
    # First K points inside radius (original order); missing slots padded with
    # the first hit.
    q = jnp.transpose(new_xyz, (0, 2, 1))  # (B,S,3)
    p = jnp.transpose(xyz, (0, 2, 1))      # (B,N,3)
    d2 = jnp.sum((q[:, :, None, :] - p[:, None, :, :]) ** 2, axis=-1)  # (B,S,N)
    N = p.shape[1]
    K = max_neighbors
    mask = d2 < radius ** 2
    key = jnp.where(mask, jnp.arange(N, dtype=jnp.int32), N)   # in-radius keep index
    order = jnp.argsort(key, axis=-1)[:, :, :K].astype(jnp.int32)  # first K hits
    kth = jnp.take_along_axis(key, order, axis=-1)
    found = kth < N
    first = order[..., 0:1]
    return jnp.where(found, order, first)


def group_points_cl(x_cl, index):
    # x_cl: (B, N, C), index: (B, S, K) -> (B, S, K, C)   (channel-last gather)
    # TODO(synk): longer term, fuse this gather into the Pallas kernel (prefetch
    # the indices via PrefetchScalarGridSpec + manual make_async_copy from a
    # pl.ANY source) so the K-amplified grouped tensor never hits HBM.
    return jax.vmap(lambda xb, ib: xb[ib])(x_cl, index)


# ----------------------------------------------------------------------------
# Pallas kernel: SharedMLP (folded conv1x1+BN) + ReLU stack + max over K.
# ----------------------------------------------------------------------------
def _mlp_max_kernel(num_layers, K, out_slab, x_ref, *refs):
    # x_ref: (G*K, C_in) bf16 tile
    # refs:  w1, b1, ..., wn, bn  (w bf16, b f32),  out_ref (G, C_out_pad) f32
    out_ref = refs[-1]
    rows = x_ref.shape[0]
    G = rows // K
    h = x_ref[...]                                      # bf16
    # Hidden layers: full-width matmul (f32 acc) + bias + ReLU, re-cast to bf16
    # only at the next matmul input.
    for i in range(num_layers - 1):
        w = refs[2 * i][...]                            # (C_prev, C) bf16
        b = refs[2 * i + 1][...]                        # (1, C) f32
        acc = jnp.dot(h, w, preferred_element_type=jnp.float32) + b
        h = jnp.maximum(acc, 0.0).astype(jnp.bfloat16)
    # Final layer: process the output channels in <=256-lane slabs so the live
    # f32 accumulator is capped at rows x out_slab (matters for wide heads under
    # v7x's 64 MiB VMEM); each slab is reduced over K and stored lane-dense.
    w_ref = refs[2 * (num_layers - 1)]
    b_ref = refs[2 * (num_layers - 1) + 1]
    C_out_pad = out_ref.shape[1]
    for s0 in range(0, C_out_pad, out_slab):
        w = w_ref[:, s0:s0 + out_slab]
        b = b_ref[:, s0:s0 + out_slab]
        acc = jnp.dot(h, w, preferred_element_type=jnp.float32) + b
        acc = jnp.maximum(acc, 0.0)
        acc = acc.reshape(G, K, acc.shape[-1])          # K % 8 == 0 -> free split
        out_ref[:, s0:s0 + out_slab] = jnp.max(acc, axis=1).astype(out_ref.dtype)


_LANE = 128
_STEP_OVERHEAD_ROWS = 1024   # ~0.35 us per grid step, expressed in row-equivalents


def _lane_pad(c):
    return max(_LANE, ((c + _LANE - 1) // _LANE) * _LANE)


def _vmem_defaults():
    """(tile budget, scoped vmem limit) tuned per TPU generation."""
    cap = None
    try:
        info = pltpu.get_tpu_info()
        for name in ("vmem_capacity_bytes", "vmem_bytes", "vmem_size_bytes"):
            v = getattr(info, name, None)
            if v:
                cap = int(v)
                break
    except Exception:
        cap = None
    if cap is not None and cap >= 96 * 2 ** 20:
        # v5e / v6e: 128 MiB VMEM -> ~45% tile budget, ~80% explicit scoped limit.
        return int(0.45 * cap), int(0.80 * cap)
    # v7x (64 MiB VMEM) or unknown part: conservative, known-good values.
    return 28 * 2 ** 20, 48 * 2 ** 20


def _tile_vmem_bytes(G, K, c_in, out_dims, out_slab):
    """Rough per-grid-step VMEM footprint (lane-padded), used for auto-tiling."""
    rows = G * K
    total = 2 * rows * _lane_pad(c_in) * 2                # double-buffered bf16 input tile
    total += 2 * G * _lane_pad(out_dims[-1]) * 4          # double-buffered f32 output tile
    # Live activations: bf16 matmul input + f32 accumulator (+ bf16 copy of the
    # next layer's input); the final layer's accumulator is capped at out_slab.
    widest = 0
    prev = c_in
    last = len(out_dims) - 1
    for li, c in enumerate(out_dims):
        acc_w = min(_lane_pad(c), out_slab) if li == last else _lane_pad(c)
        nxt_bf16 = 0 if li == last else _lane_pad(c) * 2
        widest = max(widest, _lane_pad(prev) * 2 + acc_w * 4 + nxt_bf16)
        prev = c
    total += rows * widest
    # Single-buffered (pl.Buffered(1)) grid-invariant weights / biases.
    prev = c_in
    for c in out_dims:
        total += prev * _lane_pad(c) * 2 + _lane_pad(c) * 4
        prev = c
    # ~20% headroom for Mosaic internal scratch, reshape/max temporaries, spills.
    return int(total * 1.2)


def _choose_groups_per_tile(BS, K, c_in, out_dims, out_slab, budget_bytes):
    def fits(G):
        return _tile_vmem_bytes(G, K, c_in, out_dims, out_slab) <= budget_bytes

    def cost(G):
        # Megacore model: the 1-D grid is sharded over 2 TensorCores, so the
        # critical path is ceil(n_tiles/2) tiles; each tile costs ~G*K rows of
        # work plus a fixed per-step pipeline overhead.  This prefers >=2 tiles
        # and even tile counts when they don't shrink G below the VMEM optimum.
        n = -(-BS // G)
        return -(-n // 2) * (G * K + _STEP_OVERHEAD_ROWS)

    # (a) divisors of BS (no padded rows), sublane-legal (G % 8 == 0), in budget.
    cands = [g for g in range(8, BS + 1, 8) if BS % g == 0 and fits(g)]
    if cands:
        return min(cands, key=lambda g: (cost(g), -g))
    # (b) non-divisor fallback: extra rows are zero-padded and sliced away.
    cands = [g for g in range(8, max(BS, 8) + 1, 8) if fits(g)]
    if cands:
        return min(cands, key=lambda g: (cost(g), -g))
    # (c) tiny problem (BS < 8 -> single full-array tile) or an over-tight
    # budget: smallest legal tile; the scoped vmem_limit headroom covers it.
    return BS if BS < 8 else 8


def shared_mlp_max_pool(group_feature_cl, weights, biases, *,
                        groups_per_tile=None,
                        vmem_budget_bytes=None,
                        vmem_limit_bytes=None,
                        channel_last_output=False):
    """group_feature_cl: (B, S, K, C_in) channel-last -> (B, C_out, S)
    (or (B, S, C_out) if channel_last_output, for stacked SA stages)."""
    B, S, K, C_in = group_feature_cl.shape
    BS = B * S
    num_layers = len(weights)
    C_out = weights[-1].shape[1]
    C_out_pad = _lane_pad(C_out)          # lane-dense output stores (no masked vst)
    out_slab = min(256, C_out_pad)        # final-layer accumulator chunk width

    if vmem_budget_bytes is None or vmem_limit_bytes is None:
        budget_default, limit_default = _vmem_defaults()
        if vmem_budget_bytes is None:
            vmem_budget_bytes = budget_default
        if vmem_limit_bytes is None:
            vmem_limit_bytes = limit_default

    # Pad the final layer to C_out_pad and cast weights to bf16 (biases stay f32).
    w_list, b_list = [], []
    for li, (w, b) in enumerate(zip(weights, biases)):
        if li == num_layers - 1 and C_out_pad != C_out:
            w = jnp.pad(w, ((0, 0), (0, C_out_pad - C_out)))
            b = jnp.pad(b, ((0, 0), (0, C_out_pad - C_out)))
        w_list.append(w.astype(jnp.bfloat16))
        b_list.append(b.astype(jnp.float32))
    out_dims = [w.shape[1] for w in w_list]

    if groups_per_tile is None:
        G = _choose_groups_per_tile(BS, K, C_in, out_dims, out_slab, vmem_budget_bytes)
    else:
        G = int(groups_per_tile)
        assert G > 0
    n_tiles = pl.cdiv(BS, G)
    BS_pad = n_tiles * G

    # Flat row layout: (B*S*K, C_in), neighbor index fastest -> each tile holds
    # whole groups.  Zero-pad extra groups (sliced away after the kernel).
    x = group_feature_cl.reshape(BS * K, C_in)
    if BS_pad != BS:
        x = jnp.pad(x, ((0, (BS_pad - BS) * K), (0, 0)))
    x = x.astype(jnp.bfloat16)   # no-op: the gather already produced bf16

    def run(single_buffer_weights):
        in_specs = [pl.BlockSpec((G * K, C_in), lambda i: (i, 0))]
        args = [x]
        for w, b in zip(w_list, b_list):
            if single_buffer_weights:
                # Grid-invariant weights/biases: single-buffer them so the saved
                # VMEM goes into a larger G (bigger MXU M dim, fewer grid steps).
                w_spec = pl.BlockSpec(w.shape, lambda i: (0, 0),
                                      pipeline_mode=pl.Buffered(1))
                b_spec = pl.BlockSpec(b.shape, lambda i: (0, 0),
                                      pipeline_mode=pl.Buffered(1))
            else:
                w_spec = pl.BlockSpec(w.shape, lambda i: (0, 0))
                b_spec = pl.BlockSpec(b.shape, lambda i: (0, 0))
            in_specs.extend([w_spec, b_spec])
            args.extend([w, b])
        out_spec = pl.BlockSpec((G, C_out_pad), lambda i: (i, 0))
        return pl.pallas_call(
            functools.partial(_mlp_max_kernel, num_layers, K, out_slab),
            out_shape=jax.ShapeDtypeStruct((BS_pad, C_out_pad), jnp.float32),
            grid_spec=pltpu.PrefetchScalarGridSpec(
                num_scalar_prefetch=0,
                grid=(n_tiles,),
                in_specs=in_specs,
                out_specs=out_spec,
            ),
            compiler_params=pltpu.CompilerParams(
                dimension_semantics=("parallel",),
                vmem_limit_bytes=int(vmem_limit_bytes),
            ),
        )(*args)

    try:
        out = run(True)
    except Exception:
        # Fallback: plain double-buffered constant blocks (known-good path) if
        # this jax/Mosaic build rejects pl.Buffered(1) on inputs.
        out = run(False)

    out = out[:BS, :C_out].reshape(B, S, C_out)
    if channel_last_output:
        return out                           # (B, S, C_out): skip the transpose
    return jnp.transpose(out, (0, 2, 1))     # (B, C_out, S)


# ----------------------------------------------------------------------------
# SetAbstraction module (synthetic, deterministic parameters).
# ----------------------------------------------------------------------------
class SetAbstraction:
    def __init__(self, in_channels, mlp_channels, num_centroids, radius,
                 max_neighbors, use_xyz, key):
        self.in_channels = in_channels
        self.out_channels = mlp_channels[-1]
        self.num_centroids = num_centroids
        self.radius = radius
        self.max_neighbors = max_neighbors
        self.use_xyz = use_xyz
        c_in = in_channels
        if use_xyz or in_channels == 0:
            c_in += 3
        # SharedMLP(c_in, mlp_channels, ndim=2, bn=True): Conv2d(1x1) + BN + ReLU
        # per layer.  BatchNorm is folded in eval mode with deterministic running
        # statistics into per-layer (W_eff, b_eff).
        # TODO(synk): training-mode batch statistics are not reproduced (eval fold).
        self.weights, self.biases = [], []
        prev = c_in
        for c in mlp_channels:
            key, k1, k2, k3, k4 = jax.random.split(key, 5)
            w = jax.random.normal(k1, (c, prev), jnp.float32) / jnp.sqrt(float(prev))
            gamma = 1.0 + 0.1 * jax.random.normal(k2, (c,), jnp.float32)
            beta = 0.1 * jax.random.normal(k3, (c,), jnp.float32)
            mean = 0.1 * jax.random.normal(k4, (c,), jnp.float32)
            var = jnp.full((c,), 0.5, jnp.float32)
            scale = gamma / jnp.sqrt(var + 1e-5)
            self.weights.append((w * scale[:, None]).T)          # (prev, c)
            self.biases.append((beta - mean * scale)[None, :])   # (1, c)
            prev = c

    def __call__(self, xyz, feature=None):
        # TODO(synk): num_centroids in {0, -1} branches of the reference module
        # (no-grouping / all-points-as-centroids) are not implemented here.
        assert self.num_centroids > 0
        idx = farthest_point_sample(xyz, self.num_centroids)               # (B, S)
        new_xyz = batch_index_select(xyz, idx)                             # (B, 3, S)
        nidx = ball_query(new_xyz, xyz, self.radius, self.max_neighbors)   # (B, S, K)
        # Pad the neighbor axis to a multiple of 8 (duplicates of the first hit;
        # the max over neighbors is unchanged) so the in-kernel (G, K, C) split
        # is sublane-aligned and the max lowers to a cheap sublane reduce.
        K = self.max_neighbors
        K_pad = ((K + 7) // 8) * 8
        if K_pad != K:
            pad = jnp.broadcast_to(nidx[..., :1], nidx.shape[:2] + (K_pad - K,))
            nidx = jnp.concatenate([nidx, pad], axis=-1)
        # Gather directly in channel-last layout.  The wide feature tensor is
        # cast to bf16 BEFORE the gather so the K-amplified grouped tensor is
        # written to HBM in bf16 exactly once; the 3-channel centered xyz stays
        # f32 until the concat (same numerics as rounding after centering).
        xyz_cl = jnp.transpose(xyz, (0, 2, 1))                             # (B, N, 3)
        new_xyz_cl = jnp.transpose(new_xyz, (0, 2, 1))                     # (B, S, 3)
        group_xyz = group_points_cl(xyz_cl, nidx) - new_xyz_cl[:, :, None, :]  # (B,S,K,3) f32
        if feature is not None:
            feat_cl = jnp.transpose(feature, (0, 2, 1)).astype(jnp.bfloat16)   # (B,N,C) bf16
            group_feature = group_points_cl(feat_cl, nidx)                     # (B,S,K,C) bf16
            if self.use_xyz:
                group_feature = jnp.concatenate(
                    [group_feature, group_xyz.astype(jnp.bfloat16)], axis=-1)
        else:
            group_feature = group_xyz.astype(jnp.bfloat16)
        new_feature = shared_mlp_max_pool(group_feature, self.weights, self.biases)
        return new_xyz, new_feature


def reference_forward(sa, xyz, feature):
    """Pure-JAX f32 (HIGHEST precision) reference for the same forward pass."""
    idx = farthest_point_sample(xyz, sa.num_centroids)
    new_xyz = batch_index_select(xyz, idx)
    nidx = ball_query(new_xyz, xyz, sa.radius, sa.max_neighbors)
    xyz_cl = jnp.transpose(xyz, (0, 2, 1))
    new_xyz_cl = jnp.transpose(new_xyz, (0, 2, 1))
    group_xyz = group_points_cl(xyz_cl, nidx) - new_xyz_cl[:, :, None, :]
    gf = group_points_cl(jnp.transpose(feature, (0, 2, 1)), nidx)
    if sa.use_xyz:
        gf = jnp.concatenate([gf, group_xyz], axis=-1)
    h = gf  # (B,S,K,C)
    for w, b in zip(sa.weights, sa.biases):
        h = jnp.maximum(
            jnp.einsum("bskc,cd->bskd", h, w,
                       precision=jax.lax.Precision.HIGHEST) + b[0], 0.0)
    nf = jnp.max(h, axis=2)  # (B,S,C_out)
    return new_xyz, jnp.transpose(nf, (0, 2, 1))


if __name__ == "__main__":
    key = jax.random.PRNGKey(0)
    k_xyz, k_feat, k_params = jax.random.split(key, 3)

    B, N, C_feat = 2, 32, 4
    xyz = jax.random.uniform(k_xyz, (B, 3, N), jnp.float32)        # points in unit cube
    feature = jax.random.normal(k_feat, (B, C_feat, N), jnp.float32)

    sa = SetAbstraction(in_channels=C_feat, mlp_channels=(32, 64),
                        num_centroids=8, radius=0.4, max_neighbors=8,
                        use_xyz=True, key=k_params)

    new_xyz, new_feature = sa(xyz, feature)
    jax.block_until_ready((new_xyz, new_feature))

    assert new_xyz.shape == (B, 3, 8)
    assert new_feature.shape == (B, 64, 8)

    ref_xyz, ref_feature = reference_forward(sa, xyz, feature)
    assert jnp.allclose(new_xyz, ref_xyz)
    # bf16 MXU path in the kernel vs f32 HIGHEST reference -> 2e-2 tolerance.
    assert jnp.allclose(new_feature, ref_feature, rtol=2e-2, atol=2e-2)

    print("KERNEL_OK")
</pallas_src>

<mosaic_0001>
module attributes {stable_mosaic.version = 11 : i64} {
  func.func @_mlp_max_kernel(%arg0: i32, %arg1: memref<64x7xbf16, #tpu.memory_space<vmem>>, %arg2: memref<7x32xbf16, #tpu.memory_space<vmem>>, %arg3: memref<1x32xf32, #tpu.memory_space<vmem>>, %arg4: memref<32x128xbf16, #tpu.memory_space<vmem>>, %arg5: memref<1x128xf32, #tpu.memory_space<vmem>>, %arg6: memref<8x128xf32, #tpu.memory_space<vmem>>) attributes {dimension_semantics = [#tpu.dimension_semantics<parallel>], iteration_bounds = array<i64: 2>, scalar_prefetch = 0 : i64, scratch_operands = 0 : i64, tpu.core_type = #tpu.core_type<tc>, window_params = [{transform_indices = @transform_0, window_bounds = array<i64: 64, 7>}, {pipeline_mode = #tpu.pipeline_mode<synchronous>, transform_indices = @transform_1, window_bounds = array<i64: 7, 32>}, {pipeline_mode = #tpu.pipeline_mode<synchronous>, transform_indices = @transform_2, window_bounds = array<i64: 1, 32>}, {pipeline_mode = #tpu.pipeline_mode<synchronous>, transform_indices = @transform_3, window_bounds = array<i64: 32, 128>}, {pipeline_mode = #tpu.pipeline_mode<synchronous>, transform_indices = @transform_4, window_bounds = array<i64: 1, 128>}, {transform_indices = @transform_5, window_bounds = array<i64: 8, 128>}]} {
    %c0 = arith.constant 0 : index
    %c0_0 = arith.constant 0 : index
    %0 = vector.load %arg1[%c0, %c0_0] : memref<64x7xbf16, #tpu.memory_space<vmem>>, vector<64x7xbf16>
    %c0_1 = arith.constant 0 : index
    %c0_2 = arith.constant 0 : index
    %1 = vector.load %arg2[%c0_1, %c0_2] : memref<7x32xbf16, #tpu.memory_space<vmem>>, vector<7x32xbf16>
    %c0_3 = arith.constant 0 : index
    %c0_4 = arith.constant 0 : index
    %2 = vector.load %arg3[%c0_3, %c0_4] : memref<1x32xf32, #tpu.memory_space<vmem>>, vector<1x32xf32>
    %cst = arith.constant dense<0.000000e+00> : vector<64x32xf32>
    %3 = tpu.matmul %0, %1, %cst {dimension_numbers = #tpu.dot_dimension_numbers<[1], [0], [0], [1], [0, 0, 1, 1], [], []>} : vector<64x7xbf16>, vector<7x32xbf16>, vector<64x32xf32> -> vector<64x32xf32>
    %4 = vector.broadcast %2 : vector<1x32xf32> to vector<64x32xf32>
    %5 = arith.addf %3, %4 : vector<64x32xf32>
    %cst_5 = arith.constant 0.000000e+00 : f32
    %6 = vector.broadcast %cst_5 : f32 to vector<64x32xf32>
    %7 = arith.maximumf %5, %6 : vector<64x32xf32>
    %8 = arith.truncf %7 : vector<64x32xf32> to vector<64x32xbf16>
    %c0_6 = arith.constant 0 : index
    %c0_7 = arith.constant 0 : index
    %9 = vector.load %arg4[%c0_6, %c0_7] : memref<32x128xbf16, #tpu.memory_space<vmem>>, vector<32x128xbf16>
    %c0_8 = arith.constant 0 : index
    %c0_9 = arith.constant 0 : index
    %10 = vector.load %arg5[%c0_8, %c0_9] : memref<1x128xf32, #tpu.memory_space<vmem>>, vector<1x128xf32>
    %cst_10 = arith.constant dense<0.000000e+00> : vector<64x128xf32>
    %11 = tpu.matmul %8, %9, %cst_10 {dimension_numbers = #tpu.dot_dimension_numbers<[1], [0], [0], [1], [0, 0, 1, 1], [], []>} : vector<64x32xbf16>, vector<32x128xbf16>, vector<64x128xf32> -> vector<64x128xf32>
    %12 = vector.broadcast %10 : vector<1x128xf32> to vector<64x128xf32>
    %13 = arith.addf %11, %12 : vector<64x128xf32>
    %cst_11 = arith.constant 0.000000e+00 : f32
    %14 = vector.broadcast %cst_11 : f32 to vector<64x128xf32>
    %15 = arith.maximumf %13, %14 : vector<64x128xf32>
    %16 = vector.shape_cast %15 : vector<64x128xf32> to vector<8x8x128xf32>
    %cst_12 = arith.constant dense<0xFF800000> : vector<8x128xf32>
    %17 = vector.multi_reduction <maximumf>, %16, %cst_12 [1] : vector<8x8x128xf32> to vector<8x128xf32>
    %c0_13 = arith.constant 0 : index
    %c0_14 = arith.constant 0 : index
    %18 = vector.load %arg6[%c0_13, %c0_14] : memref<8x128xf32, #tpu.memory_space<vmem>>, vector<8x128xf32>
    tpu.vector_store %arg6[%c0_13, %c0_14], %17 {strides = array<i32>} : memref<8x128xf32, #tpu.memory_space<vmem>>, vector<8x128xf32>,
    return
  }
  func.func @transform_0(%arg0: i32) -> (i32, i32) {
    %c0_i32 = arith.constant 0 : i32
    %c0_i32_0 = arith.constant 0 : i32
    return %arg0, %c0_i32 : i32, i32
  }
  func.func @transform_1(%arg0: i32) -> (i32, i32) {
    %c0_i32 = arith.constant 0 : i32
    %c0_i32_0 = arith.constant 0 : i32
    %c0_i32_1 = arith.constant 0 : i32
    return %c0_i32, %c0_i32_0 : i32, i32
  }
  func.func @transform_2(%arg0: i32) -> (i32, i32) {
    %c0_i32 = arith.constant 0 : i32
    %c0_i32_0 = arith.constant 0 : i32
    %c0_i32_1 = arith.constant 0 : i32
    return %c0_i32, %c0_i32_0 : i32, i32
  }
  func.func @transform_3(%arg0: i32) -> (i32, i32) {
    %c0_i32 = arith.constant 0 : i32
    %c0_i32_0 = arith.constant 0 : i32
    %c0_i32_1 = arith.constant 0 : i32
    return %c0_i32, %c0_i32_0 : i32, i32
  }
  func.func @transform_4(%arg0: i32) -> (i32, i32) {
    %c0_i32 = arith.constant 0 : i32
    %c0_i32_0 = arith.constant 0 : i32
    %c0_i32_1 = arith.constant 0 : i32
    return %c0_i32, %c0_i32_0 : i32, i32
  }
  func.func @transform_5(%arg0: i32) -> (i32, i32) {
    %c0_i32 = arith.constant 0 : i32
    %c0_i32_0 = arith.constant 0 : i32
    return %arg0, %c0_i32 : i32, i32
  }
}

module attributes {stable_mosaic.version = 11 : i64} {
  func.func @_mlp_max_kernel(%arg0: i32, %arg1: memref<64x7xbf16, #tpu.memory_space<vmem>>, %arg2: memref<7x32xbf16, #tpu.memory_space<vmem>>, %arg3: memref<1x32xf32, #tpu.memory_space<vmem>>, %arg4: memref<32x128xbf16, #tpu.memory_space<vmem>>, %arg5: memref<1x128xf32, #tpu.memory_space<vmem>>, %arg6: memref<8x128xf32, #tpu.memory_space<vmem>>) attributes {dimension_semantics = [#tpu.dimension_semantics<parallel>], iteration_bounds = array<i64: 2>, scalar_prefetch = 0 : i64, scratch_operands = 0 : i64, tpu.core_type = #tpu.core_type<tc>, window_params = [{transform_indices = @transform_0, window_bounds = array<i64: 64, 7>}, {pipeline_mode = #tpu.pipeline_mode<synchronous>, transform_indices = @transform_1, window_bounds = array<i64: 7, 32>}, {pipeline_mode = #tpu.pipeline_mode<synchronous>, transform_indices = @transform_2, window_bounds = array<i64: 1, 32>}, {pipeline_mode = #tpu.pipeline_mode<synchronous>, transform_indices = @transform_3, window_bounds = array<i64: 32, 128>}, {pipeline_mode = #tpu.pipeline_mode<synchronous>, transform_indices = @transform_4, window_bounds = array<i64: 1, 128>}, {transform_indices = @transform_5, window_bounds = array<i64: 8, 128>}]} {
    %c0 = arith.constant 0 : index
    %c0_0 = arith.constant 0 : index
    %0 = vector.load %arg1[%c0, %c0_0] : memref<64x7xbf16, #tpu.memory_space<vmem>>, vector<64x7xbf16>
    %c0_1 = arith.constant 0 : index
    %c0_2 = arith.constant 0 : index
    %1 = vector.load %arg2[%c0_1, %c0_2] : memref<7x32xbf16, #tpu.memory_space<vmem>>, vector<7x32xbf16>
    %c0_3 = arith.constant 0 : index
    %c0_4 = arith.constant 0 : index
    %2 = vector.load %arg3[%c0_3, %c0_4] : memref<1x32xf32, #tpu.memory_space<vmem>>, vector<1x32xf32>
    %cst = arith.constant dense<0.000000e+00> : vector<64x32xf32>
    %3 = tpu.matmul %0, %1, %cst {dimension_numbers = #tpu.dot_dimension_numbers<[1], [0], [0], [1], [0, 0, 1, 1], [], []>} : vector<64x7xbf16>, vector<7x32xbf16>, vector<64x32xf32> -> vector<64x32xf32>
    %4 = vector.broadcast %2 : vector<1x32xf32> to vector<64x32xf32>
    %5 = arith.addf %3, %4 : vector<64x32xf32>
    %cst_5 = arith.constant 0.000000e+00 : f32
    %6 = vector.broadcast %cst_5 : f32 to vector<64x32xf32>
    %7 = arith.maximumf %5, %6 : vector<64x32xf32>
    %8 = arith.truncf %7 : vector<64x32xf32> to vector<64x32xbf16>
    %c0_6 = arith.constant 0 : index
    %c0_7 = arith.constant 0 : index
    %9 = vector.load %arg4[%c0_6, %c0_7] : memref<32x128xbf16, #tpu.memory_space<vmem>>, vector<32x128xbf16>
    %c0_8 = arith.constant 0 : index
    %c0_9 = arith.constant 0 : index
    %10 = vector.load %arg5[%c0_8, %c0_9] : memref<1x128xf32, #tpu.memory_space<vmem>>, vector<1x128xf32>
    %cst_10 = arith.constant dense<0.000000e+00> : vector<64x128xf32>
    %11 = tpu.matmul %8, %9, %cst_10 {dimension_numbers = #tpu.dot_dimension_numbers<[1], [0], [0], [1], [0, 0, 1, 1], [], []>} : vector<64x32xbf16>, vector<32x128xbf16>, vector<64x128xf32> -> vector<64x128xf32>
    %12 = vector.broadcast %10 : vector<1x128xf32> to vector<64x128xf32>
    %13 = arith.addf %11, %12 : vector<64x128xf32>
    %cst_11 = arith.constant 0.000000e+00 : f32
    %14 = vector.broadcast %cst_11 : f32 to vector<64x128xf32>
    %15 = arith.maximumf %13, %14 : vector<64x128xf32>
    %16 = vector.shape_cast %15 : vector<64x128xf32> to vector<8x8x128xf32>
    %cst_12 = arith.constant dense<0xFF800000> : vector<8x128xf32>
    %17 = vector.multi_reduction <maximumf>, %16, %cst_12 [1] : vector<8x8x128xf32> to vector<8x128xf32>
    %c0_13 = arith.constant 0 : index
    %c0_14 = arith.constant 0 : index
    %18 = vector.load %arg6[%c0_13, %c0_14] : memref<8x128xf32, #tpu.memory_space<vmem>>, vector<8x128xf32>
    tpu.vector_store %arg6[%c0_13, %c0_14], %17 {strides = array<i32>} : memref<8x128xf32, #tpu.memory_space<vmem>>, vector<8x128xf32>,
    return
  }
  func.func @transform_0(%arg0: i32) -> (i32, i32) {
    %c0_i32 = arith.constant 0 : i32
    %c0_i32_0 = arith.constant 0 : i32
    return %arg0, %c0_i32 : i32, i32
  }
  func.func @transform_1(%arg0: i32) -> (i32, i32) {
    %c0_i32 = arith.constant 0 : i32
    %c0_i32_0 = arith.constant 0 : i32
    %c0_i32_1 = arith.constant 0 : i32
    return %c0_i32, %c0_i32_0 : i32, i32
  }
  func.func @transform_2(%arg0: i32) -> (i32, i32) {
    %c0_i32 = arith.constant 0 : i32
    %c0_i32_0 = arith.constant 0 : i32
    %c0_i32_1 = arith.constant 0 : i32
    return %c0_i32, %c0_i32_0 : i32, i32
  }
  func.func @transform_3(%arg0: i32) -> (i32, i32) {
    %c0_i32 = arith.constant 0 : i32
    %c0_i32_0 = arith.constant 0 : i32
    %c0_i32_1 = arith.constant 0 : i32
    return %c0_i32, %c0_i32_0 : i32, i32
  }
  func.func @transform_4(%arg0: i32) -> (i32, i32) {
    %c0_i32 = arith.constant 0 : i32
    %c0_i32_0 = arith.constant 0 : i32
    %c0_i32_1 = arith.constant 0 : i32
    return %c0_i32, %c0_i32_0 : i32, i32
  }
  func.func @transform_5(%arg0: i32) -> (i32, i32) {
    %c0_i32 = arith.constant 0 : i32
    %c0_i32_0 = arith.constant 0 : i32
    return %arg0, %c0_i32 : i32, i32
  }
}

</mosaic_0001>

<llo_original>
// kernel: tpu_custom_call.1
$region0: #{tpu_custom_call.1}
  #allocation0 [shape = 'u32[]', space=smem, size = 0x4, offset = 0x4, fixed_abs, tag = 'smem constant byte address 0x4 - core index']
  #allocation1 [shape = 'u32[144,128]{1,0:T(1,128)}', space=vmem, size = 0x12000, scoped, tag = 'internal scratch']
  %s0 = inlined_call_operand.vmem [shape: bf16[128,7], index: 0, kind: input, shape index: {}]
  %s1 = inlined_call_operand.vmem [shape: bf16[7,32], index: 1, kind: input, shape index: {}]
  %s2 = inlined_call_operand.vmem [shape: f32[1,32], index: 2, kind: input, shape index: {}]
  %s3 = inlined_call_operand.vmem [shape: bf16[32,128], index: 3, kind: input, shape index: {}]
  %s4 = inlined_call_operand.vmem [shape: f32[1,128], index: 4, kind: input, shape index: {}]
  %s5 = inlined_call_operand.hbm [shape: f32[16,128], index: 5, kind: output, shape index: {}]
  %s6 = sld [smem:[#allocation0]]
  $region53: #{tpu_custom_call.1} parent=0
    _
  %s8 = ssub.s32 1, %s6
  %s9 = scalar_select 0, %s8, %s6
  $region1: #{tpu_custom_call.1} parent=0
    #allocation2 [shape = 'u8[8192]{0}', space=vmem, size = 0x2000, scoped, tag = 'output window, operand 0']
    #allocation3 [shape = 's32[2]{0}', space=sflag, size = 0x8, scoped, tag = 'scoped memory for tpu_custom_call.1']
    %10 = vsyncpa [#allocation3], 0
    %s11 = scalar_lea.sflag [#allocation3], 1
    %12 = vsyncpa %s11, 0
    loop: start=0, step=1, limit=4
    $region2: #{tpu_custom_call.1} parent=1 // loop_pre_header
      _
    $region3: #{tpu_custom_call.1} parent=1 // loop_header
      %s14 = sphi 0, %s18
      %p15 = scmp.ge.s32.totalorder %s14, 4
      %s24 = sphi 0, %s26
      %s27 = sphi 0, %s24
      %s28 = sphi 0, %s27
      %s44 = sphi 0, %s28
      %s48 = sphi 0, %s48
      %s50 = sphi 0, %s48
      %s51 = sphi 0, %s50
      %s65 = sphi 0, %s51
      %s69 = sphi 0, %s69
      %s71 = sphi 0, %s69
      %s72 = sphi 0, %s71
      %s86 = sphi 0, %s72
      %s90 = sphi 0, %s90
      %s92 = sphi 0, %s90
      %s93 = sphi 0, %s92
      %s107 = sphi 0, %s93
      %s111 = sphi 0, %s111
      %s113 = sphi 0, %s111
      %s114 = sphi 0, %s113
      %s128 = sphi 0, %s114
      %s134 = sphi 0, %s136
      %s137 = sphi 0, %s134
      %s138 = sphi 0, %s137
      %s154 = sphi 0, %s138
    $region4: #{tpu_custom_call.1} parent=1 // loop_header_branch
      %17 = sbr.rel (%p15) target = $region8
    $region5: #{tpu_custom_call.1} parent=1 // loop_body
      %s19 = ssub.s32 %s14, 1
      %s20 = ssub.s32 %s14, 2
      %s21 = sadd.s32 %s14, 1
      %s22 = ssub.s32 %s14, %s21
      %p23 = scmp.eq.s32.totalorder %s22, 0
      %s25 = sadd.s32 %s24, 1
      %s26 = scalar_select %p23, %s24, %s25
      %p29 = pneg %p23
      %p30 = scmp.eq.s32.totalorder %s14, 1
      %p31 = por %p29, %p30
      %p32 = scmp.ne.s32.totalorder %s24, %s27
      %p33 = scmp.eq.s32.totalorder %s14, 0
      %p34 = por %p32, %p33
      %p35 = scmp.ne.s32.totalorder %s24, %s27
      %p36 = scmp.eq.s32.totalorder %s19, 1
      %p37 = por %p35, %p36
      %p38 = scmp.ne.s32.totalorder %s27, %s28
      %p39 = scmp.eq.s32.totalorder %s19, 0
      %p40 = por %p38, %p39
      %p41 = scmp.ne.s32.totalorder %s27, %s28
      %p42 = scmp.eq.s32.totalorder %s20, 1
      %p43 = por %p41, %p42
      %p45 = scmp.ne.s32.totalorder %s28, %s44
      %p46 = scmp.eq.s32.totalorder %s20, 0
      %p47 = por %p45, %p46
      %s49 = sadd.s32 %s48, 1
      %p52 = scmp.eq.s32.totalorder %s14, 1
      %p53 = scmp.ne.s32.totalorder %s48, %s50
      %p54 = scmp.eq.s32.totalorder %s14, 0
      %p55 = por %p53, %p54
      %p56 = scmp.ne.s32.totalorder %s48, %s50
      %p57 = scmp.eq.s32.totalorder %s19, 1
      %p58 = por %p56, %p57
      %p59 = scmp.ne.s32.totalorder %s50, %s51
      %p60 = scmp.eq.s32.totalorder %s19, 0
      %p61 = por %p59, %p60
      %p62 = scmp.ne.s32.totalorder %s50, %s51
      %p63 = scmp.eq.s32.totalorder %s20, 1
      %p64 = por %p62, %p63
      %p66 = scmp.ne.s32.totalorder %s51, %s65
      %p67 = scmp.eq.s32.totalorder %s20, 0
      %p68 = por %p66, %p67
      %s70 = sadd.s32 %s69, 1
      %p73 = scmp.eq.s32.totalorder %s14, 1
      %p74 = scmp.ne.s32.totalorder %s69, %s71
      %p75 = scmp.eq.s32.totalorder %s14, 0
      %p76 = por %p74, %p75
      %p77 = scmp.ne.s32.totalorder %s69, %s71
      %p78 = scmp.eq.s32.totalorder %s19, 1
      %p79 = por %p77, %p78
      %p80 = scmp.ne.s32.totalorder %s71, %s72
      %p81 = scmp.eq.s32.totalorder %s19, 0
      %p82 = por %p80, %p81
      %p83 = scmp.ne.s32.totalorder %s71, %s72
      %p84 = scmp.eq.s32.totalorder %s20, 1
      %p85 = por %p83, %p84
      %p87 = scmp.ne.s32.totalorder %s72, %s86
      %p88 = scmp.eq.s32.totalorder %s20, 0
      %p89 = por %p87, %p88
      %s91 = sadd.s32 %s90, 1
      %p94 = scmp.eq.s32.totalorder %s14, 1
      %p95 = scmp.ne.s32.totalorder %s90, %s92
      %p96 = scmp.eq.s32.totalorder %s14, 0
      %p97 = por %p95, %p96
      %p98 = scmp.ne.s32.totalorder %s90, %s92
      %p99 = scmp.eq.s32.totalorder %s19, 1
      %p100 = por %p98, %p99
      %p101 = scmp.ne.s32.totalorder %s92, %s93
      %p102 = scmp.eq.s32.totalorder %s19, 0
      %p103 = por %p101, %p102
      %p104 = scmp.ne.s32.totalorder %s92, %s93
      %p105 = scmp.eq.s32.totalorder %s20, 1
      %p106 = por %p104, %p105
      %p108 = scmp.ne.s32.totalorder %s93, %s107
      %p109 = scmp.eq.s32.totalorder %s20, 0
      %p110 = por %p108, %p109
      %s112 = sadd.s32 %s111, 1
      %p115 = scmp.eq.s32.totalorder %s14, 1
      %p116 = scmp.ne.s32.totalorder %s111, %s113
      %p117 = scmp.eq.s32.totalorder %s14, 0
      %p118 = por %p116, %p117
      %p119 = scmp.ne.s32.totalorder %s111, %s113
      %p120 = scmp.eq.s32.totalorder %s19, 1
      %p121 = por %p119, %p120
      %p122 = scmp.ne.s32.totalorder %s113, %s114
      %p123 = scmp.eq.s32.totalorder %s19, 0
      %p124 = por %p122, %p123
      %p125 = scmp.ne.s32.totalorder %s113, %s114
      %p126 = scmp.eq.s32.totalorder %s20, 1
      %p127 = por %p125, %p126
      %p129 = scmp.ne.s32.totalorder %s114, %s128
      %p130 = scmp.eq.s32.totalorder %s20, 0
      %p131 = por %p129, %p130
      %s132 = ssub.s32 %s14, %s21
      %p133 = scmp.eq.s32.totalorder %s132, 0
      %s135 = sadd.s32 %s134, 1
      %s136 = scalar_select %p133, %s134, %s135
      %p139 = pneg %p133
      %p140 = scmp.eq.s32.totalorder %s14, 1
      %p141 = por %p139, %p140
      %p142 = scmp.ne.s32.totalorder %s134, %s137
      %p143 = scmp.eq.s32.totalorder %s14, 0
      %p144 = por %p142, %p143
      %p145 = scmp.ne.s32.totalorder %s134, %s137
      %p146 = scmp.eq.s32.totalorder %s19, 1
      %p147 = por %p145, %p146
      %p148 = scmp.ne.s32.totalorder %s137, %s138
      %p149 = scmp.eq.s32.totalorder %s19, 0
      %p150 = por %p148, %p149
      %p151 = scmp.ne.s32.totalorder %s137, %s138
      %p152 = scmp.eq.s32.totalorder %s20, 1
      %p153 = por %p151, %p152
      %p155 = scmp.ne.s32.totalorder %s138, %s154
      %p156 = scmp.eq.s32.totalorder %s20, 0
      %p157 = por %p155, %p156
      %p158 = scmp.le.s32.totalorder 1, %s14
      %p159 = scmp.lt.s32.totalorder %s14, 3
      %p160 = pnand %p158, %p159
      %p161 = pneg %p160
      // Predicated region
      $region9: #{tpu_custom_call.1} parent=5 // pred_check
        _
      $region10: #{tpu_custom_call.1} parent=5 // pred_check_branch
        %163 = sbr.rel (%p160) target = $region12
      $region11: #{tpu_custom_call.1} parent=5 // pred_region
        %s164 = ssub.s32 %s14, 1
        // Predicated region
        $region13: #{tpu_custom_call.1} parent=11 // pred_check
          %p165 = pneg %p61
        $region14: #{tpu_custom_call.1} parent=11 // pred_check_branch
          %167 = sbr.rel (%p165) target = $region16
        $region15: #{tpu_custom_call.1} parent=11 // pred_region
          _
        $region16: #{tpu_custom_call.1} parent=11 // pred_fallthru
          _
        // Predicated region
        $region17: #{tpu_custom_call.1} parent=11 // pred_check
          %p168 = pneg %p82
        $region18: #{tpu_custom_call.1} parent=11 // pred_check_branch
          %170 = sbr.rel (%p168) target = $region20
        $region19: #{tpu_custom_call.1} parent=11 // pred_region
          _
        $region20: #{tpu_custom_call.1} parent=11 // pred_fallthru
          _
        // Predicated region
        $region21: #{tpu_custom_call.1} parent=11 // pred_check
          %p171 = pneg %p103
        $region22: #{tpu_custom_call.1} parent=11 // pred_check_branch
          %173 = sbr.rel (%p171) target = $region24
        $region23: #{tpu_custom_call.1} parent=11 // pred_region
          _
        $region24: #{tpu_custom_call.1} parent=11 // pred_fallthru
          _
        // Predicated region
        $region25: #{tpu_custom_call.1} parent=11 // pred_check
          %p174 = pneg %p124
        $region26: #{tpu_custom_call.1} parent=11 // pred_check_branch
          %176 = sbr.rel (%p174) target = $region28
        $region27: #{tpu_custom_call.1} parent=11 // pred_region
          _
        $region28: #{tpu_custom_call.1} parent=11 // pred_fallthru
          _
      $region12: #{tpu_custom_call.1} parent=5 // pred_fallthru
        _
      %p177 = scmp.lt.s32.totalorder %s14, 2
      // Predicated region
      $region29: #{tpu_custom_call.1} parent=5 // pred_check
        %p178 = pneg %p177
      $region30: #{tpu_custom_call.1} parent=5 // pred_check_branch
        %180 = sbr.rel (%p178) target = $region32
      $region31: #{tpu_custom_call.1} parent=5 // pred_region
        // Predicated region
        $region33: #{tpu_custom_call.1} parent=31 // pred_check
          %p181 = pneg %p34
        $region34: #{tpu_custom_call.1} parent=31 // pred_check_branch
          %183 = sbr.rel (%p181) target = $region36
        $region35: #{tpu_custom_call.1} parent=31 // pred_region
          %s184 = smul.u32 8, %s14
          %p185 = scmp.lt.s32.totalorder %s184, 15
          %s186 = scalar_select %p185, %s184, 15
          %s187 = smul.addr %s186, 4
          %s188 = scalar_lea.vmem %s0, %s187
          %s189 = smul.u32 8, %s14
        $region36: #{tpu_custom_call.1} parent=31 // pred_fallthru
          _
      $region32: #{tpu_custom_call.1} parent=5 // pred_fallthru
        _
      %p190 = scmp.le.s32.totalorder 1, %s14
      %p191 = scmp.lt.s32.totalorder %s14, 3
      %p192 = pnand %p190, %p191
      %p193 = pneg %p192
      // Predicated region
      $region37: #{tpu_custom_call.1} parent=5 // pred_check
        _
      $region38: #{tpu_custom_call.1} parent=5 // pred_check_branch
        %195 = sbr.rel (%p192) target = $region40
      $region39: #{tpu_custom_call.1} parent=5 // pred_region
        %s196 = ssub.s32 %s14, 1
        %s197 = smul.u32 8, %s19
        %p198 = scmp.lt.s32.totalorder %s197, 15
        %s199 = scalar_select %p198, %s197, 15
        %s200 = smul.addr %s199, 4
        %s201 = scalar_lea.vmem %s0, %s200
        %p202 = pneg %p40
        %p203 = pneg %p37
        %p204 = pneg %p61
        %p205 = pneg %p58
        %p206 = pneg %p82
        %p207 = pneg %p79
        %p208 = pneg %p103
        %p209 = pneg %p100
        %p210 = pneg %p124
        %p211 = pneg %p121
        %p212 = pneg %p150
        %p213 = pneg %p147
        %s214 = sand.u32 %s137, 1
        %s215 = scalar_lea.sflag [#allocation3], %s214
        %s216 = sand.u32 %s137, 1
        %s217 = smul.addr %s216, 8
        %s218 = scalar_lea.vmem [#allocation2], %s217
        %s219 = smul.u32 8, %s19
        %p220 = scmp.lt.s32.totalorder %s219, 15
        %s221 = scalar_select %p220, %s219, 15
        %s222 = smul.addr %s221, 4
        %s223 = scalar_lea.vmem %s0, %s222
        %s224 = smul.u32 8, %s19
        %v226 = vld [vmem:[%s223] sm:$0xf]
        %v227 = vld [vmem:[%s223 + $0x4] sm:$0xf]
        %v228 = vld [vmem:[%s223 + $0x8] sm:$0xf]
        %v229 = vld [vmem:[%s223 + $0xc] sm:$0xf]
        %v230 = vld [vmem:[%s223 + $0x10] sm:$0xf]
        %v231 = vld [vmem:[%s223 + $0x14] sm:$0xf]
        %v232 = vld [vmem:[%s223 + $0x18] sm:$0xf]
        %v233 = vld [vmem:[%s223 + $0x1c] sm:$0xf]
        %v234 = vld [vmem:[%s1] sm:$0xf]
        %v235 = vld [vmem:[%s2] sm:$0x1]
        %v237 = vlaneseq
        %v238 = vshrl.u32 %v237, 7
        %v239 = vsub.s32 0, %v238
        %v240 = vrot.slane %v235, %v239
        %v250 = vunpack.c.l.b16 %v226
        %v251 = vunpack.c.l.b16 %v227
        %v252 = vunpack.c.l.b16 %v228
        %v253 = vunpack.c.l.b16 %v229
        %v254 = vunpack.c.l.b16 %v230
        %v255 = vunpack.c.l.b16 %v231
        %v256 = vunpack.c.l.b16 %v232
        %v257 = vunpack.c.l.b16 %v233
        %v258 = vpack.c.b16 %v251, %v250
        %v259 = vpack.c.b16 %v253, %v252
        %v260 = vpack.c.b16 %v255, %v254
        %v261 = vpack.c.b16 %v257, %v256
        %vm262 = vcmask 56320
        %v264 = vsel %vm262, %v258, 0
        %v267 = vsel %vm262, %v259, 0
        %v270 = vsel %vm262, %v260, 0
        %v273 = vsel %vm262, %v261, 0
        %vm275 = vcmask 1042432
        %vm276 = vcmask 1043456
        %v277 = vsel %vm275, 4294967295, 65535
        %v278 = vsel %vm276, %v277, 0
        %v280 = vand.u32 %v234, %v278
        %282 = vmatprep.subr.bf16.mxu0 0
        %283 = vmatpush1.bf16.msra.mxu0 %v280
        %284 = vmatprep.subr.bf16.mxu0 0
        %285 = vmatpush1.bf16.msra.mxu0 0
        %286 = vmatprep.subr.bf16.mxu0 0
        %287 = vmatpush1.bf16.msra.mxu0 0
        %288 = vmatprep.subr.bf16.mxu0 0
        %289 = vmatpush1.bf16.msra.mxu0 0
        %290 = vmatprep.subr.bf16.mxu0 0
        %291 = vmatpush1.bf16.msra.mxu0 0
        %292 = vmatprep.subr.bf16.mxu0 0
        %293 = vmatpush1.bf16.msra.mxu0 0
        %294 = vmatprep.subr.bf16.mxu0 0
        %295 = vmatpush1.bf16.msra.mxu0 0
        %296 = vmatprep.subr.bf16.mxu0 0
        %297 = vmatpush1.bf16.msra.mxu0 0
        %298 = vmatprep.subr.bf16.mxu0 0
        %299 = vmatpush1.bf16.msra.mxu0 0
        %300 = vmatprep.subr.bf16.mxu0 0
        %301 = vmatpush1.bf16.msra.mxu0 0
        %302 = vmatprep.subr.bf16.mxu0 0
        %303 = vmatpush1.bf16.msra.mxu0 0
        %304 = vmatprep.subr.bf16.mxu0 0
        %305 = vmatpush1.bf16.msra.mxu0 0
        %306 = vmatprep.subr.bf16.mxu0 0
        %307 = vmatpush1.bf16.msra.mxu0 0
        %308 = vmatprep.subr.bf16.mxu0 0
        %309 = vmatpush1.bf16.msra.mxu0 0
        %310 = vmatprep.subr.bf16.mxu0 0
        %311 = vmatpush1.bf16.msra.mxu0 0
        %312 = vmatprep.subr.bf16.mxu0 0
        %313 = vmatpush1.bf16.msra.mxu0 0
        %314 = vmatprep.mubr.bf16.mxu0 0
        %315 = vmatmul.mubr.bf16.gmra.mrb[0].mxu0 %v264
        %v316 = vpop.f32.mrb[0].mxu0
        %v317 = vadd.f32 %v240, %v316
        %v318 = vpop.f32.mrb[0].mxu0
        %v319 = vpop.f32.mrb[0].mxu0
        %v320 = vadd.f32 %v240, %v319
        %v321 = vpop.f32.mrb[0].mxu0
        %322 = vmatprep.mubr.bf16.mxu0 0
        %323 = vmatmul.mubr.bf16.gmra.mrb[0].mxu0 %v267
        %v324 = vpop.f32.mrb[0].mxu0
        %v325 = vadd.f32 %v240, %v324
        %v326 = vpop.f32.mrb[0].mxu0
        %v327 = vpop.f32.mrb[0].mxu0
        %v328 = vadd.f32 %v240, %v327
        %v329 = vpop.f32.mrb[0].mxu0
        %330 = vmatprep.mubr.bf16.mxu0 0
        %331 = vmatmul.mubr.bf16.gmra.mrb[0].mxu0 %v270
        %v332 = vpop.f32.mrb[0].mxu0
        %v333 = vadd.f32 %v240, %v332
        %v334 = vpop.f32.mrb[0].mxu0
        %v335 = vpop.f32.mrb[0].mxu0
        %v336 = vadd.f32 %v240, %v335
        %v337 = vpop.f32.mrb[0].mxu0
        %338 = vmatprep.mubr.bf16.mxu0 0
        %339 = vmatmul.mubr.bf16.gmra.mrb[0].mxu0 %v273
        %v340 = vpop.f32.mrb[0].mxu0
        %v341 = vadd.f32 %v240, %v340
        %v342 = vpop.f32.mrb[0].mxu0
        %v343 = vpop.f32.mrb[0].mxu0
        %v344 = vadd.f32 %v240, %v343
        %v345 = vpop.f32.mrb[0].mxu0
        %346 = vdwg.mxu0
        %v347 = vmax.f32 %v317, 0.0
        %v348 = vmax.f32 %v320, 0.0
        %v349 = vmax.f32 %v325, 0.0
        %v350 = vmax.f32 %v328, 0.0
        %v351 = vmax.f32 %v333, 0.0
        %v352 = vmax.f32 %v336, 0.0
        %v353 = vmax.f32 %v341, 0.0
        %v354 = vmax.f32 %v344, 0.0
        %v355 = vpack.c.bf16 %v348, %v347
        %v356 = vpack.c.bf16 %v350, %v349
        %v357 = vpack.c.bf16 %v352, %v351
        %v358 = vpack.c.bf16 %v354, %v353
        %v359 = vld [vmem:[%s3] sm:$0xf]
        %v360 = vld [vmem:[%s3 + $0x4] sm:$0xf]
        %v361 = vld [vmem:[%s3 + $0x8] sm:$0xf]
        %v362 = vld [vmem:[%s3 + $0xc] sm:$0xf]
        %v363 = vld [vmem:[%s4] sm:$0x1]
        %v365 = vlaneseq
        %v366 = vshrl.u32 %v365, 7
        %v367 = vsub.s32 0, %v366
        %v368 = vrot.slane %v363, %v367
        %v374 = vunpack.c.l.b16 %v359
        %v375 = vunpack.c.l.b16 %v360
        %v376 = vunpack.c.l.b16 %v361
        %v377 = vunpack.c.l.b16 %v362
        %v378 = vpack.c.b16 %v375, %v374
        %v379 = vpack.c.b16 %v377, %v376
        %vm382 = vcmask 261120
        %v384 = vsel %vm382, %v355, 0
        %v387 = vsel %vm382, %v356, 0
        %v390 = vsel %vm382, %v357, 0
        %v393 = vsel %vm382, %v358, 0
        %395 = vmatprep.subr.bf16.mxu0 0
        %396 = vmatpush1.bf16.msra.mxu0 %v378
        %397 = vmatprep.subr.bf16.mxu0 0
        %398 = vmatpush1.bf16.msra.mxu0 %v379
        %399 = vmatprep.subr.bf16.mxu0 0
        %400 = vmatpush1.bf16.msra.mxu0 0
        %401 = vmatprep.subr.bf16.mxu0 0
        %402 = vmatpush1.bf16.msra.mxu0 0
        %403 = vmatprep.subr.bf16.mxu0 0
        %404 = vmatpush1.bf16.msra.mxu0 0
        %405 = vmatprep.subr.bf16.mxu0 0
        %406 = vmatpush1.bf16.msra.mxu0 0
        %407 = vmatprep.subr.bf16.mxu0 0
        %408 = vmatpush1.bf16.msra.mxu0 0
        %409 = vmatprep.subr.bf16.mxu0 0
        %410 = vmatpush1.bf16.msra.mxu0 0
        %411 = vmatprep.subr.bf16.mxu0 0
        %412 = vmatpush1.bf16.msra.mxu0 0
        %413 = vmatprep.subr.bf16.mxu0 0
        %414 = vmatpush1.bf16.msra.mxu0 0
        %415 = vmatprep.subr.bf16.mxu0 0
        %416 = vmatpush1.bf16.msra.mxu0 0
        %417 = vmatprep.subr.bf16.mxu0 0
        %418 = vmatpush1.bf16.msra.mxu0 0
        %419 = vmatprep.subr.bf16.mxu0 0
        %420 = vmatpush1.bf16.msra.mxu0 0
        %421 = vmatprep.subr.bf16.mxu0 0
        %422 = vmatpush1.bf16.msra.mxu0 0
        %423 = vmatprep.subr.bf16.mxu0 0
        %424 = vmatpush1.bf16.msra.mxu0 0
        %425 = vmatprep.subr.bf16.mxu0 0
        %426 = vmatpush1.bf16.msra.mxu0 0
        %427 = vmatprep.mubr.bf16.mxu0 0
        %428 = vmatmul.mubr.bf16.gmra.mrb[0].mxu0 %v384
        %v429 = vpop.f32.mrb[0].mxu0
        %v430 = vadd.f32 %v368, %v429
        %v431 = vpop.f32.mrb[0].mxu0
        %v432 = vpop.f32.mrb[0].mxu0
        %v433 = vadd.f32 %v368, %v432
        %v434 = vpop.f32.mrb[0].mxu0
        %435 = vmatprep.mubr.bf16.mxu0 0
        %436 = vmatmul.mubr.bf16.gmra.mrb[0].mxu0 %v387
        %v437 = vpop.f32.mrb[0].mxu0
        %v438 = vadd.f32 %v368, %v437
        %v439 = vpop.f32.mrb[0].mxu0
        %v440 = vpop.f32.mrb[0].mxu0
        %v441 = vadd.f32 %v368, %v440
        %v442 = vpop.f32.mrb[0].mxu0
        %443 = vmatprep.mubr.bf16.mxu0 0
        %444 = vmatmul.mubr.bf16.gmra.mrb[0].mxu0 %v390
        %v445 = vpop.f32.mrb[0].mxu0
        %v446 = vadd.f32 %v368, %v445
        %v447 = vpop.f32.mrb[0].mxu0
        %v448 = vpop.f32.mrb[0].mxu0
        %v449 = vadd.f32 %v368, %v448
        %v450 = vpop.f32.mrb[0].mxu0
        %451 = vmatprep.mubr.bf16.mxu0 0
        %452 = vmatmul.mubr.bf16.gmra.mrb[0].mxu0 %v393
        %v453 = vpop.f32.mrb[0].mxu0
        %v454 = vadd.f32 %v368, %v453
        %v455 = vpop.f32.mrb[0].mxu0
        %v456 = vpop.f32.mrb[0].mxu0
        %v457 = vadd.f32 %v368, %v456
        %v458 = vpop.f32.mrb[0].mxu0
        %459 = vdwg.mxu0
        %v460 = vmax.f32 %v430, 0.0
        %v461 = vmax.f32 %v433, 0.0
        %v462 = vmax.f32 %v438, 0.0
        %v463 = vmax.f32 %v441, 0.0
        %v464 = vmax.f32 %v446, 0.0
        %v465 = vmax.f32 %v449, 0.0
        %v466 = vmax.f32 %v454, 0.0
        %v467 = vmax.f32 %v457, 0.0
        %v468 = vrot.slane %v460, 4
        %v469 = vmax.f32 %v460, %v468
        %v470 = vrot.slane %v469, 2
        %v471 = vmax.f32 %v469, %v470
        %v472 = vrot.slane %v471, 1
        %v473 = vmax.f32 %v471, %v472
        %v474 = vrot.slane %v461, 4
        %v475 = vmax.f32 %v461, %v474
        %v476 = vrot.slane %v475, 2
        %v477 = vmax.f32 %v475, %v476
        %v478 = vrot.slane %v477, 1
        %v479 = vmax.f32 %v477, %v478
        %v480 = vrot.slane %v462, 4
        %v481 = vmax.f32 %v462, %v480
        %v482 = vrot.slane %v481, 2
        %v483 = vmax.f32 %v481, %v482
        %v484 = vrot.slane %v483, 1
        %v485 = vmax.f32 %v483, %v484
        %v486 = vrot.slane %v463, 4
        %v487 = vmax.f32 %v463, %v486
        %v488 = vrot.slane %v487, 2
        %v489 = vmax.f32 %v487, %v488
        %v490 = vrot.slane %v489, 1
        %v491 = vmax.f32 %v489, %v490
        %v492 = vrot.slane %v464, 4
        %v493 = vmax.f32 %v464, %v492
        %v494 = vrot.slane %v493, 2
        %v495 = vmax.f32 %v493, %v494
        %v496 = vrot.slane %v495, 1
        %v497 = vmax.f32 %v495, %v496
        %v498 = vrot.slane %v465, 4
        %v499 = vmax.f32 %v465, %v498
        %v500 = vrot.slane %v499, 2
        %v501 = vmax.f32 %v499, %v500
        %v502 = vrot.slane %v501, 1
        %v503 = vmax.f32 %v501, %v502
        %v504 = vrot.slane %v466, 4
        %v505 = vmax.f32 %v466, %v504
        %v506 = vrot.slane %v505, 2
        %v507 = vmax.f32 %v505, %v506
        %v508 = vrot.slane %v507, 1
        %v509 = vmax.f32 %v507, %v508
        %v510 = vrot.slane %v467, 4
        %v511 = vmax.f32 %v467, %v510
        %v512 = vrot.slane %v511, 2
        %v513 = vmax.f32 %v511, %v512
        %v514 = vrot.slane %v513, 1
        %v515 = vmax.f32 %v513, %v514
        %vm524 = vcmask 1041409
        %v525 = vsel %vm524, %v479, %v473
        %vm526 = vcmask 1042434
        %v527 = vsel %vm526, %v485, %v525
        %vm528 = vcmask 1043459
        %v529 = vsel %vm528, %v491, %v527
        %vm530 = vcmask 1044484
        %v531 = vsel %vm530, %v497, %v529
        %vm532 = vcmask 1045509
        %v533 = vsel %vm532, %v503, %v531
        %vm534 = vcmask 1046534
        %v535 = vsel %vm534, %v509, %v533
        %vm536 = vcmask 1047559
        %v537 = vsel %vm536, %v515, %v535
        %539 = vst [vmem:[%s218] sm:$0xff] %v537
        %s540 = sand.u32 %s137, 1
        %s541 = scalar_lea.sflag [#allocation3], %s540
        %s542 = sand.u32 %s137, 1
        %s543 = smul.addr %s542, 8
        %s544 = scalar_lea.vmem [#allocation2], %s543
        // Predicated region
        $region41: #{tpu_custom_call.1} parent=39 // pred_check
          %p545 = pneg %p147
        $region42: #{tpu_custom_call.1} parent=39 // pred_check_branch
          %547 = sbr.rel (%p545) target = $region44
        $region43: #{tpu_custom_call.1} parent=39 // pred_region
          %s549 = ssub.s32 128, 128
          %550 = vsyncadd %s541, %s549
          %s551 = smul.addr %s19, 128
          %s552 = scalar_lea.hbm %s5, %s551
          %s554 = sshll.u32 %s544, 4
          %s555 = int_to_ptr.vmem [resolvable:$true] %s554
          %557 = dma.vmem_to_hbm [thread:$0]  %s555, 128, %s552, %s541
        $region44: #{tpu_custom_call.1} parent=39 // pred_fallthru
          _
      $region40: #{tpu_custom_call.1} parent=5 // pred_fallthru
        _
      %p558 = scmp.le.s32.totalorder 2, %s14
      // Predicated region
      $region45: #{tpu_custom_call.1} parent=5 // pred_check
        %p559 = pneg %p558
      $region46: #{tpu_custom_call.1} parent=5 // pred_check_branch
        %561 = sbr.rel (%p559) target = $region48
      $region47: #{tpu_custom_call.1} parent=5 // pred_region
        %s562 = ssub.s32 %s14, 2
        // Predicated region
        $region49: #{tpu_custom_call.1} parent=47 // pred_check
          %p563 = pneg %p153
        $region50: #{tpu_custom_call.1} parent=47 // pred_check_branch
          %565 = sbr.rel (%p563) target = $region52
        $region51: #{tpu_custom_call.1} parent=47 // pred_region
          %s566 = sand.u32 %s138, 1
          %s567 = scalar_lea.sflag [#allocation3], %s566
          %s568 = sand.u32 %s138, 1
          %s569 = smul.addr %s568, 8
          %s570 = scalar_lea.vmem [#allocation2], %s569
          %571 = dma.done %s567, 128
        $region52: #{tpu_custom_call.1} parent=47 // pred_fallthru
          _
      $region48: #{tpu_custom_call.1} parent=5 // pred_fallthru
        _
    $region6: #{tpu_custom_call.1} parent=1 // loop_footer
      %s18 = sadd.s32 1, %s14
    $region7: #{tpu_custom_call.1} parent=1 // loop_footer_branch
      %13 = sbr.rel target = $region3
    $region8: #{tpu_custom_call.1} parent=1 // loop_exit
      _
    %572 = vsyncpa [#allocation3], 1
    %s573 = scalar_lea.sflag [#allocation3], 1
    %574 = vsyncpa %s573, 1

// kernel: tpu_custom_call.1
$region0: #{tpu_custom_call.1}
  #allocation0 [shape = 'u32[]', space=smem, size = 0x4, offset = 0x4, fixed_abs, tag = 'smem constant byte address 0x4 - core index']
  #allocation1 [shape = 'u32[144,128]{1,0:T(1,128)}', space=vmem, size = 0x12000, scoped, tag = 'internal scratch']
  %s0 = inlined_call_operand.vmem [shape: bf16[128,7], index: 0, kind: input, shape index: {}]
  %s1 = inlined_call_operand.vmem [shape: bf16[7,32], index: 1, kind: input, shape index: {}]
  %s2 = inlined_call_operand.vmem [shape: f32[1,32], index: 2, kind: input, shape index: {}]
  %s3 = inlined_call_operand.vmem [shape: bf16[32,128], index: 3, kind: input, shape index: {}]
  %s4 = inlined_call_operand.vmem [shape: f32[1,128], index: 4, kind: input, shape index: {}]
  %s5 = inlined_call_operand.hbm [shape: f32[16,128], index: 5, kind: output, shape index: {}]
  %s6 = sld [smem:[#allocation0]]
  $region53: #{tpu_custom_call.1} parent=0
    _
  %s8 = ssub.s32 1, %s6
  %s9 = scalar_select 0, %s8, %s6
  $region1: #{tpu_custom_call.1} parent=0
    #allocation2 [shape = 'u8[8192]{0}', space=vmem, size = 0x2000, scoped, tag = 'output window, operand 0']
    #allocation3 [shape = 's32[2]{0}', space=sflag, size = 0x8, scoped, tag = 'scoped memory for tpu_custom_call.1']
    %10 = vsyncpa [#allocation3], 0
    %s11 = scalar_lea.sflag [#allocation3], 1
    %12 = vsyncpa %s11, 0
    loop: start=0, step=1, limit=4
    $region2: #{tpu_custom_call.1} parent=1 // loop_pre_header
      _
    $region3: #{tpu_custom_call.1} parent=1 // loop_header
      %s14 = sphi 0, %s18
      %p15 = scmp.ge.s32.totalorder %s14, 4
      %s24 = sphi 0, %s26
      %s27 = sphi 0, %s24
      %s28 = sphi 0, %s27
      %s44 = sphi 0, %s28
      %s48 = sphi 0, %s48
      %s50 = sphi 0, %s48
      %s51 = sphi 0, %s50
      %s65 = sphi 0, %s51
      %s69 = sphi 0, %s69
      %s71 = sphi 0, %s69
      %s72 = sphi 0, %s71
      %s86 = sphi 0, %s72
      %s90 = sphi 0, %s90
      %s92 = sphi 0, %s90
      %s93 = sphi 0, %s92
      %s107 = sphi 0, %s93
      %s111 = sphi 0, %s111
      %s113 = sphi 0, %s111
      %s114 = sphi 0, %s113
      %s128 = sphi 0, %s114
      %s134 = sphi 0, %s136
      %s137 = sphi 0, %s134
      %s138 = sphi 0, %s137
      %s154 = sphi 0, %s138
    $region4: #{tpu_custom_call.1} parent=1 // loop_header_branch
      %17 = sbr.rel (%p15) target = $region8
    $region5: #{tpu_custom_call.1} parent=1 // loop_body
      %s19 = ssub.s32 %s14, 1
      %s20 = ssub.s32 %s14, 2
      %s21 = sadd.s32 %s14, 1
      %s22 = ssub.s32 %s14, %s21
      %p23 = scmp.eq.s32.totalorder %s22, 0
      %s25 = sadd.s32 %s24, 1
      %s26 = scalar_select %p23, %s24, %s25
      %p29 = pneg %p23
      %p30 = scmp.eq.s32.totalorder %s14, 1
      %p31 = por %p29, %p30
      %p32 = scmp.ne.s32.totalorder %s24, %s27
      %p33 = scmp.eq.s32.totalorder %s14, 0
      %p34 = por %p32, %p33
      %p35 = scmp.ne.s32.totalorder %s24, %s27
      %p36 = scmp.eq.s32.totalorder %s19, 1
      %p37 = por %p35, %p36
      %p38 = scmp.ne.s32.totalorder %s27, %s28
      %p39 = scmp.eq.s32.totalorder %s19, 0
      %p40 = por %p38, %p39
      %p41 = scmp.ne.s32.totalorder %s27, %s28
      %p42 = scmp.eq.s32.totalorder %s20, 1
      %p43 = por %p41, %p42
      %p45 = scmp.ne.s32.totalorder %s28, %s44
      %p46 = scmp.eq.s32.totalorder %s20, 0
      %p47 = por %p45, %p46
      %s49 = sadd.s32 %s48, 1
      %p52 = scmp.eq.s32.totalorder %s14, 1
      %p53 = scmp.ne.s32.totalorder %s48, %s50
      %p54 = scmp.eq.s32.totalorder %s14, 0
      %p55 = por %p53, %p54
      %p56 = scmp.ne.s32.totalorder %s48, %s50
      %p57 = scmp.eq.s32.totalorder %s19, 1
      %p58 = por %p56, %p57
      %p59 = scmp.ne.s32.totalorder %s50, %s51
      %p60 = scmp.eq.s32.totalorder %s19, 0
      %p61 = por %p59, %p60
      %p62 = scmp.ne.s32.totalorder %s50, %s51
      %p63 = scmp.eq.s32.totalorder %s20, 1
      %p64 = por %p62, %p63
      %p66 = scmp.ne.s32.totalorder %s51, %s65
      %p67 = scmp.eq.s32.totalorder %s20, 0
      %p68 = por %p66, %p67
      %s70 = sadd.s32 %s69, 1
      %p73 = scmp.eq.s32.totalorder %s14, 1
      %p74 = scmp.ne.s32.totalorder %s69, %s71
      %p75 = scmp.eq.s32.totalorder %s14, 0
      %p76 = por %p74, %p75
      %p77 = scmp.ne.s32.totalorder %s69, %s71
      %p78 = scmp.eq.s32.totalorder %s19, 1
      %p79 = por %p77, %p78
      %p80 = scmp.ne.s32.totalorder %s71, %s72
      %p81 = scmp.eq.s32.totalorder %s19, 0
      %p82 = por %p80, %p81
      %p83 = scmp.ne.s32.totalorder %s71, %s72
      %p84 = scmp.eq.s32.totalorder %s20, 1
      %p85 = por %p83, %p84
      %p87 = scmp.ne.s32.totalorder %s72, %s86
      %p88 = scmp.eq.s32.totalorder %s20, 0
      %p89 = por %p87, %p88
      %s91 = sadd.s32 %s90, 1
      %p94 = scmp.eq.s32.totalorder %s14, 1
      %p95 = scmp.ne.s32.totalorder %s90, %s92
      %p96 = scmp.eq.s32.totalorder %s14, 0
      %p97 = por %p95, %p96
      %p98 = scmp.ne.s32.totalorder %s90, %s92
      %p99 = scmp.eq.s32.totalorder %s19, 1
      %p100 = por %p98, %p99
      %p101 = scmp.ne.s32.totalorder %s92, %s93
      %p102 = scmp.eq.s32.totalorder %s19, 0
      %p103 = por %p101, %p102
      %p104 = scmp.ne.s32.totalorder %s92, %s93
      %p105 = scmp.eq.s32.totalorder %s20, 1
      %p106 = por %p104, %p105
      %p108 = scmp.ne.s32.totalorder %s93, %s107
      %p109 = scmp.eq.s32.totalorder %s20, 0
      %p110 = por %p108, %p109
      %s112 = sadd.s32 %s111, 1
      %p115 = scmp.eq.s32.totalorder %s14, 1
      %p116 = scmp.ne.s32.totalorder %s111, %s113
      %p117 = scmp.eq.s32.totalorder %s14, 0
      %p118 = por %p116, %p117
      %p119 = scmp.ne.s32.totalorder %s111, %s113
      %p120 = scmp.eq.s32.totalorder %s19, 1
      %p121 = por %p119, %p120
      %p122 = scmp.ne.s32.totalorder %s113, %s114
      %p123 = scmp.eq.s32.totalorder %s19, 0
      %p124 = por %p122, %p123
      %p125 = scmp.ne.s32.totalorder %s113, %s114
      %p126 = scmp.eq.s32.totalorder %s20, 1
      %p127 = por %p125, %p126
      %p129 = scmp.ne.s32.totalorder %s114, %s128
      %p130 = scmp.eq.s32.totalorder %s20, 0
      %p131 = por %p129, %p130
      %s132 = ssub.s32 %s14, %s21
      %p133 = scmp.eq.s32.totalorder %s132, 0
      %s135 = sadd.s32 %s134, 1
      %s136 = scalar_select %p133, %s134, %s135
      %p139 = pneg %p133
      %p140 = scmp.eq.s32.totalorder %s14, 1
      %p141 = por %p139, %p140
      %p142 = scmp.ne.s32.totalorder %s134, %s137
      %p143 = scmp.eq.s32.totalorder %s14, 0
      %p144 = por %p142, %p143
      %p145 = scmp.ne.s32.totalorder %s134, %s137
      %p146 = scmp.eq.s32.totalorder %s19, 1
      %p147 = por %p145, %p146
      %p148 = scmp.ne.s32.totalorder %s137, %s138
      %p149 = scmp.eq.s32.totalorder %s19, 0
      %p150 = por %p148, %p149
      %p151 = scmp.ne.s32.totalorder %s137, %s138
      %p152 = scmp.eq.s32.totalorder %s20, 1
      %p153 = por %p151, %p152
      %p155 = scmp.ne.s32.totalorder %s138, %s154
      %p156 = scmp.eq.s32.totalorder %s20, 0
      %p157 = por %p155, %p156
      %p158 = scmp.le.s32.totalorder 1, %s14
      %p159 = scmp.lt.s32.totalorder %s14, 3
      %p160 = pnand %p158, %p159
      %p161 = pneg %p160
      // Predicated region
      $region9: #{tpu_custom_call.1} parent=5 // pred_check
        _
      $region10: #{tpu_custom_call.1} parent=5 // pred_check_branch
        %163 = sbr.rel (%p160) target = $region12
      $region11: #{tpu_custom_call.1} parent=5 // pred_region
        %s164 = ssub.s32 %s14, 1
        // Predicated region
        $region13: #{tpu_custom_call.1} parent=11 // pred_check
          %p165 = pneg %p61
        $region14: #{tpu_custom_call.1} parent=11 // pred_check_branch
          %167 = sbr.rel (%p165) target = $region16
        $region15: #{tpu_custom_call.1} parent=11 // pred_region
          _
        $region16: #{tpu_custom_call.1} parent=11 // pred_fallthru
          _
        // Predicated region
        $region17: #{tpu_custom_call.1} parent=11 // pred_check
          %p168 = pneg %p82
        $region18: #{tpu_custom_call.1} parent=11 // pred_check_branch
          %170 = sbr.rel (%p168) target = $region20
        $region19: #{tpu_custom_call.1} parent=11 // pred_region
          _
        $region20: #{tpu_custom_call.1} parent=11 // pred_fallthru
          _
        // Predicated region
        $region21: #{tpu_custom_call.1} parent=11 // pred_check
          %p171 = pneg %p103
        $region22: #{tpu_custom_call.1} parent=11 // pred_check_branch
          %173 = sbr.rel (%p171) target = $region24
        $region23: #{tpu_custom_call.1} parent=11 // pred_region
          _
        $region24: #{tpu_custom_call.1} parent=11 // pred_fallthru
          _
        // Predicated region
        $region25: #{tpu_custom_call.1} parent=11 // pred_check
          %p174 = pneg %p124
        $region26: #{tpu_custom_call.1} parent=11 // pred_check_branch
          %176 = sbr.rel (%p174) target = $region28
        $region27: #{tpu_custom_call.1} parent=11 // pred_region
          _
        $region28: #{tpu_custom_call.1} parent=11 // pred_fallthru
          _
      $region12: #{tpu_custom_call.1} parent=5 // pred_fallthru
        _
      %p177 = scmp.lt.s32.totalorder %s14, 2
      // Predicated region
      $region29: #{tpu_custom_call.1} parent=5 // pred_check
        %p178 = pneg %p177
      $region30: #{tpu_custom_call.1} parent=5 // pred_check_branch
        %180 = sbr.rel (%p178) target = $region32
      $region31: #{tpu_custom_call.1} parent=5 // pred_region
        // Predicated region
        $region33: #{tpu_custom_call.1} parent=31 // pred_check
          %p181 = pneg %p34
        $region34: #{tpu_custom_call.1} parent=31 // pred_check_branch
          %183 = sbr.rel (%p181) target = $region36
        $region35: #{tpu_custom_call.1} parent=31 // pred_region
          %s184 = smul.u32 8, %s14
          %p185 = scmp.lt.s32.totalorder %s184, 15
          %s186 = scalar_select %p185, %s184, 15
          %s187 = smul.addr %s186, 4
          %s188 = scalar_lea.vmem %s0, %s187
          %s189 = smul.u32 8, %s14
        $region36: #{tpu_custom_call.1} parent=31 // pred_fallthru
          _
      $region32: #{tpu_custom_call.1} parent=5 // pred_fallthru
        _
      %p190 = scmp.le.s32.totalorder 1, %s14
      %p191 = scmp.lt.s32.totalorder %s14, 3
      %p192 = pnand %p190, %p191
      %p193 = pneg %p192
      // Predicated region
      $region37: #{tpu_custom_call.1} parent=5 // pred_check
        _
      $region38: #{tpu_custom_call.1} parent=5 // pred_check_branch
        %195 = sbr.rel (%p192) target = $region40
      $region39: #{tpu_custom_call.1} parent=5 // pred_region
        %s196 = ssub.s32 %s14, 1
        %s197 = smul.u32 8, %s19
        %p198 = scmp.lt.s32.totalorder %s197, 15
        %s199 = scalar_select %p198, %s197, 15
        %s200 = smul.addr %s199, 4
        %s201 = scalar_lea.vmem %s0, %s200
        %p202 = pneg %p40
        %p203 = pneg %p37
        %p204 = pneg %p61
        %p205 = pneg %p58
        %p206 = pneg %p82
        %p207 = pneg %p79
        %p208 = pneg %p103
        %p209 = pneg %p100
        %p210 = pneg %p124
        %p211 = pneg %p121
        %p212 = pneg %p150
        %p213 = pneg %p147
        %s214 = sand.u32 %s137, 1
        %s215 = scalar_lea.sflag [#allocation3], %s214
        %s216 = sand.u32 %s137, 1
        %s217 = smul.addr %s216, 8
        %s218 = scalar_lea.vmem [#allocation2], %s217
        %s219 = smul.u32 8, %s19
        %p220 = scmp.lt.s32.totalorder %s219, 15
        %s221 = scalar_select %p220, %s219, 15
        %s222 = smul.addr %s221, 4
        %s223 = scalar_lea.vmem %s0, %s222
        %s224 = smul.u32 8, %s19
        %v226 = vld [vmem:[%s223] sm:$0xf]
        %v227 = vld [vmem:[%s223 + $0x4] sm:$0xf]
        %v228 = vld [vmem:[%s223 + $0x8] sm:$0xf]
        %v229 = vld [vmem:[%s223 + $0xc] sm:$0xf]
        %v230 = vld [vmem:[%s223 + $0x10] sm:$0xf]
        %v231 = vld [vmem:[%s223 + $0x14] sm:$0xf]
        %v232 = vld [vmem:[%s223 + $0x18] sm:$0xf]
        %v233 = vld [vmem:[%s223 + $0x1c] sm:$0xf]
        %v234 = vld [vmem:[%s1] sm:$0xf]
        %v235 = vld [vmem:[%s2] sm:$0x1]
        %v237 = vlaneseq
        %v238 = vshrl.u32 %v237, 7
        %v239 = vsub.s32 0, %v238
        %v240 = vrot.slane %v235, %v239
        %v250 = vunpack.c.l.b16 %v226
        %v251 = vunpack.c.l.b16 %v227
        %v252 = vunpack.c.l.b16 %v228
        %v253 = vunpack.c.l.b16 %v229
        %v254 = vunpack.c.l.b16 %v230
        %v255 = vunpack.c.l.b16 %v231
        %v256 = vunpack.c.l.b16 %v232
        %v257 = vunpack.c.l.b16 %v233
        %v258 = vpack.c.b16 %v251, %v250
        %v259 = vpack.c.b16 %v253, %v252
        %v260 = vpack.c.b16 %v255, %v254
        %v261 = vpack.c.b16 %v257, %v256
        %vm262 = vcmask 56320
        %v264 = vsel %vm262, %v258, 0
        %v267 = vsel %vm262, %v259, 0
        %v270 = vsel %vm262, %v260, 0
        %v273 = vsel %vm262, %v261, 0
        %vm275 = vcmask 1042432
        %vm276 = vcmask 1043456
        %v277 = vsel %vm275, 4294967295, 65535
        %v278 = vsel %vm276, %v277, 0
        %v280 = vand.u32 %v234, %v278
        %282 = vmatprep.subr.bf16.mxu0 0
        %283 = vmatpush1.bf16.msra.mxu0 %v280
        %284 = vmatprep.subr.bf16.mxu0 0
        %285 = vmatpush1.bf16.msra.mxu0 0
        %286 = vmatprep.subr.bf16.mxu0 0
        %287 = vmatpush1.bf16.msra.mxu0 0
        %288 = vmatprep.subr.bf16.mxu0 0
        %289 = vmatpush1.bf16.msra.mxu0 0
        %290 = vmatprep.subr.bf16.mxu0 0
        %291 = vmatpush1.bf16.msra.mxu0 0
        %292 = vmatprep.subr.bf16.mxu0 0
        %293 = vmatpush1.bf16.msra.mxu0 0
        %294 = vmatprep.subr.bf16.mxu0 0
        %295 = vmatpush1.bf16.msra.mxu0 0
        %296 = vmatprep.subr.bf16.mxu0 0
        %297 = vmatpush1.bf16.msra.mxu0 0
        %298 = vmatprep.subr.bf16.mxu0 0
        %299 = vmatpush1.bf16.msra.mxu0 0
        %300 = vmatprep.subr.bf16.mxu0 0
        %301 = vmatpush1.bf16.msra.mxu0 0
        %302 = vmatprep.subr.bf16.mxu0 0
        %303 = vmatpush1.bf16.msra.mxu0 0
        %304 = vmatprep.subr.bf16.mxu0 0
        %305 = vmatpush1.bf16.msra.mxu0 0
        %306 = vmatprep.subr.bf16.mxu0 0
        %307 = vmatpush1.bf16.msra.mxu0 0
        %308 = vmatprep.subr.bf16.mxu0 0
        %309 = vmatpush1.bf16.msra.mxu0 0
        %310 = vmatprep.subr.bf16.mxu0 0
        %311 = vmatpush1.bf16.msra.mxu0 0
        %312 = vmatprep.subr.bf16.mxu0 0
        %313 = vmatpush1.bf16.msra.mxu0 0
        %314 = vmatprep.mubr.bf16.mxu0 0
        %315 = vmatmul.mubr.bf16.gmra.mrb[0].mxu0 %v264
        %v316 = vpop.f32.mrb[0].mxu0
        %v317 = vadd.f32 %v240, %v316
        %v318 = vpop.f32.mrb[0].mxu0
        %v319 = vpop.f32.mrb[0].mxu0
        %v320 = vadd.f32 %v240, %v319
        %v321 = vpop.f32.mrb[0].mxu0
        %322 = vmatprep.mubr.bf16.mxu0 0
        %323 = vmatmul.mubr.bf16.gmra.mrb[0].mxu0 %v267
        %v324 = vpop.f32.mrb[0].mxu0
        %v325 = vadd.f32 %v240, %v324
        %v326 = vpop.f32.mrb[0].mxu0
        %v327 = vpop.f32.mrb[0].mxu0
        %v328 = vadd.f32 %v240, %v327
        %v329 = vpop.f32.mrb[0].mxu0
        %330 = vmatprep.mubr.bf16.mxu0 0
        %331 = vmatmul.mubr.bf16.gmra.mrb[0].mxu0 %v270
        %v332 = vpop.f32.mrb[0].mxu0
        %v333 = vadd.f32 %v240, %v332
        %v334 = vpop.f32.mrb[0].mxu0
        %v335 = vpop.f32.mrb[0].mxu0
        %v336 = vadd.f32 %v240, %v335
        %v337 = vpop.f32.mrb[0].mxu0
        %338 = vmatprep.mubr.bf16.mxu0 0
        %339 = vmatmul.mubr.bf16.gmra.mrb[0].mxu0 %v273
        %v340 = vpop.f32.mrb[0].mxu0
        %v341 = vadd.f32 %v240, %v340
        %v342 = vpop.f32.mrb[0].mxu0
        %v343 = vpop.f32.mrb[0].mxu0
        %v344 = vadd.f32 %v240, %v343
        %v345 = vpop.f32.mrb[0].mxu0
        %346 = vdwg.mxu0
        %v347 = vmax.f32 %v317, 0.0
        %v348 = vmax.f32 %v320, 0.0
        %v349 = vmax.f32 %v325, 0.0
        %v350 = vmax.f32 %v328, 0.0
        %v351 = vmax.f32 %v333, 0.0
        %v352 = vmax.f32 %v336, 0.0
        %v353 = vmax.f32 %v341, 0.0
        %v354 = vmax.f32 %v344, 0.0
        %v355 = vpack.c.bf16 %v348, %v347
        %v356 = vpack.c.bf16 %v350, %v349
        %v357 = vpack.c.bf16 %v352, %v351
        %v358 = vpack.c.bf16 %v354, %v353
        %v359 = vld [vmem:[%s3] sm:$0xf]
        %v360 = vld [vmem:[%s3 + $0x4] sm:$0xf]
        %v361 = vld [vmem:[%s3 + $0x8] sm:$0xf]
        %v362 = vld [vmem:[%s3 + $0xc] sm:$0xf]
        %v363 = vld [vmem:[%s4] sm:$0x1]
        %v365 = vlaneseq
        %v366 = vshrl.u32 %v365, 7
        %v367 = vsub.s32 0, %v366
        %v368 = vrot.slane %v363, %v367
        %v374 = vunpack.c.l.b16 %v359
        %v375 = vunpack.c.l.b16 %v360
        %v376 = vunpack.c.l.b16 %v361
        %v377 = vunpack.c.l.b16 %v362
        %v378 = vpack.c.b16 %v375, %v374
        %v379 = vpack.c.b16 %v377, %v376
        %vm382 = vcmask 261120
        %v384 = vsel %vm382, %v355, 0
        %v387 = vsel %vm382, %v356, 0
        %v390 = vsel %vm382, %v357, 0
        %v393 = vsel %vm382, %v358, 0
        %395 = vmatprep.subr.bf16.mxu0 0
        %396 = vmatpush1.bf16.msra.mxu0 %v378
        %397 = vmatprep.subr.bf16.mxu0 0
        %398 = vmatpush1.bf16.msra.mxu0 %v379
        %399 = vmatprep.subr.bf16.mxu0 0
        %400 = vmatpush1.bf16.msra.mxu0 0
        %401 = vmatprep.subr.bf16.mxu0 0
        %402 = vmatpush1.bf16.msra.mxu0 0
        %403 = vmatprep.subr.bf16.mxu0 0
        %404 = vmatpush1.bf16.msra.mxu0 0
        %405 = vmatprep.subr.bf16.mxu0 0
        %406 = vmatpush1.bf16.msra.mxu0 0
        %407 = vmatprep.subr.bf16.mxu0 0
        %408 = vmatpush1.bf16.msra.mxu0 0
        %409 = vmatprep.subr.bf16.mxu0 0
        %410 = vmatpush1.bf16.msra.mxu0 0
        %411 = vmatprep.subr.bf16.mxu0 0
        %412 = vmatpush1.bf16.msra.mxu0 0
        %413 = vmatprep.subr.bf16.mxu0 0
        %414 = vmatpush1.bf16.msra.mxu0 0
        %415 = vmatprep.subr.bf16.mxu0 0
        %416 = vmatpush1.bf16.msra.mxu0 0
        %417 = vmatprep.subr.bf16.mxu0 0
        %418 = vmatpush1.bf16.msra.mxu0 0
        %419 = vmatprep.subr.bf16.mxu0 0
        %420 = vmatpush1.bf16.msra.mxu0 0
        %421 = vmatprep.subr.bf16.mxu0 0
        %422 = vmatpush1.bf16.msra.mxu0 0
        %423 = vmatprep.subr.bf16.mxu0 0
        %424 = vmatpush1.bf16.msra.mxu0 0
        %425 = vmatprep.subr.bf16.mxu0 0
        %426 = vmatpush1.bf16.msra.mxu0 0
        %427 = vmatprep.mubr.bf16.mxu0 0
        %428 = vmatmul.mubr.bf16.gmra.mrb[0].mxu0 %v384
        %v429 = vpop.f32.mrb[0].mxu0
        %v430 = vadd.f32 %v368, %v429
        %v431 = vpop.f32.mrb[0].mxu0
        %v432 = vpop.f32.mrb[0].mxu0
        %v433 = vadd.f32 %v368, %v432
        %v434 = vpop.f32.mrb[0].mxu0
        %435 = vmatprep.mubr.bf16.mxu0 0
        %436 = vmatmul.mubr.bf16.gmra.mrb[0].mxu0 %v387
        %v437 = vpop.f32.mrb[0].mxu0
        %v438 = vadd.f32 %v368, %v437
        %v439 = vpop.f32.mrb[0].mxu0
        %v440 = vpop.f32.mrb[0].mxu0
        %v441 = vadd.f32 %v368, %v440
        %v442 = vpop.f32.mrb[0].mxu0
        %443 = vmatprep.mubr.bf16.mxu0 0
        %444 = vmatmul.mubr.bf16.gmra.mrb[0].mxu0 %v390
        %v445 = vpop.f32.mrb[0].mxu0
        %v446 = vadd.f32 %v368, %v445
        %v447 = vpop.f32.mrb[0].mxu0
        %v448 = vpop.f32.mrb[0].mxu0
        %v449 = vadd.f32 %v368, %v448
        %v450 = vpop.f32.mrb[0].mxu0
        %451 = vmatprep.mubr.bf16.mxu0 0
        %452 = vmatmul.mubr.bf16.gmra.mrb[0].mxu0 %v393
        %v453 = vpop.f32.mrb[0].mxu0
        %v454 = vadd.f32 %v368, %v453
        %v455 = vpop.f32.mrb[0].mxu0
        %v456 = vpop.f32.mrb[0].mxu0
        %v457 = vadd.f32 %v368, %v456
        %v458 = vpop.f32.mrb[0].mxu0
        %459 = vdwg.mxu0
        %v460 = vmax.f32 %v430, 0.0
        %v461 = vmax.f32 %v433, 0.0
        %v462 = vmax.f32 %v438, 0.0
        %v463 = vmax.f32 %v441, 0.0
        %v464 = vmax.f32 %v446, 0.0
        %v465 = vmax.f32 %v449, 0.0
        %v466 = vmax.f32 %v454, 0.0
        %v467 = vmax.f32 %v457, 0.0
        %v468 = vrot.slane %v460, 4
        %v469 = vmax.f32 %v460, %v468
        %v470 = vrot.slane %v469, 2
        %v471 = vmax.f32 %v469, %v470
        %v472 = vrot.slane %v471, 1
        %v473 = vmax.f32 %v471, %v472
        %v474 = vrot.slane %v461, 4
        %v475 = vmax.f32 %v461, %v474
        %v476 = vrot.slane %v475, 2
        %v477 = vmax.f32 %v475, %v476
        %v478 = vrot.slane %v477, 1
        %v479 = vmax.f32 %v477, %v478
        %v480 = vrot.slane %v462, 4
        %v481 = vmax.f32 %v462, %v480
        %v482 = vrot.slane %v481, 2
        %v483 = vmax.f32 %v481, %v482
        %v484 = vrot.slane %v483, 1
        %v485 = vmax.f32 %v483, %v484
        %v486 = vrot.slane %v463, 4
        %v487 = vmax.f32 %v463, %v486
        %v488 = vrot.slane %v487, 2
        %v489 = vmax.f32 %v487, %v488
        %v490 = vrot.slane %v489, 1
        %v491 = vmax.f32 %v489, %v490
        %v492 = vrot.slane %v464, 4
        %v493 = vmax.f32 %v464, %v492
        %v494 = vrot.slane %v493, 2
        %v495 = vmax.f32 %v493, %v494
        %v496 = vrot.slane %v495, 1
        %v497 = vmax.f32 %v495, %v496
        %v498 = vrot.slane %v465, 4
        %v499 = vmax.f32 %v465, %v498
        %v500 = vrot.slane %v499, 2
        %v501 = vmax.f32 %v499, %v500
        %v502 = vrot.slane %v501, 1
        %v503 = vmax.f32 %v501, %v502
        %v504 = vrot.slane %v466, 4
        %v505 = vmax.f32 %v466, %v504
        %v506 = vrot.slane %v505, 2
        %v507 = vmax.f32 %v505, %v506
        %v508 = vrot.slane %v507, 1
        %v509 = vmax.f32 %v507, %v508
        %v510 = vrot.slane %v467, 4
        %v511 = vmax.f32 %v467, %v510
        %v512 = vrot.slane %v511, 2
        %v513 = vmax.f32 %v511, %v512
        %v514 = vrot.slane %v513, 1
        %v515 = vmax.f32 %v513, %v514
        %vm524 = vcmask 1041409
        %v525 = vsel %vm524, %v479, %v473
        %vm526 = vcmask 1042434
        %v527 = vsel %vm526, %v485, %v525
        %vm528 = vcmask 1043459
        %v529 = vsel %vm528, %v491, %v527
        %vm530 = vcmask 1044484
        %v531 = vsel %vm530, %v497, %v529
        %vm532 = vcmask 1045509
        %v533 = vsel %vm532, %v503, %v531
        %vm534 = vcmask 1046534
        %v535 = vsel %vm534, %v509, %v533
        %vm536 = vcmask 1047559
        %v537 = vsel %vm536, %v515, %v535
        %539 = vst [vmem:[%s218] sm:$0xff] %v537
        %s540 = sand.u32 %s137, 1
        %s541 = scalar_lea.sflag [#allocation3], %s540
        %s542 = sand.u32 %s137, 1
        %s543 = smul.addr %s542, 8
        %s544 = scalar_lea.vmem [#allocation2], %s543
        // Predicated region
        $region41: #{tpu_custom_call.1} parent=39 // pred_check
          %p545 = pneg %p147
        $region42: #{tpu_custom_call.1} parent=39 // pred_check_branch
          %547 = sbr.rel (%p545) target = $region44
        $region43: #{tpu_custom_call.1} parent=39 // pred_region
          %s549 = ssub.s32 128, 128
          %550 = vsyncadd %s541, %s549
          %s551 = smul.addr %s19, 128
          %s552 = scalar_lea.hbm %s5, %s551
          %s554 = sshll.u32 %s544, 4
          %s555 = int_to_ptr.vmem [resolvable:$true] %s554
          %557 = dma.vmem_to_hbm [thread:$0]  %s555, 128, %s552, %s541
        $region44: #{tpu_custom_call.1} parent=39 // pred_fallthru
          _
      $region40: #{tpu_custom_call.1} parent=5 // pred_fallthru
        _
      %p558 = scmp.le.s32.totalorder 2, %s14
      // Predicated region
      $region45: #{tpu_custom_call.1} parent=5 // pred_check
        %p559 = pneg %p558
      $region46: #{tpu_custom_call.1} parent=5 // pred_check_branch
        %561 = sbr.rel (%p559) target = $region48
      $region47: #{tpu_custom_call.1} parent=5 // pred_region
        %s562 = ssub.s32 %s14, 2
        // Predicated region
        $region49: #{tpu_custom_call.1} parent=47 // pred_check
          %p563 = pneg %p153
        $region50: #{tpu_custom_call.1} parent=47 // pred_check_branch
          %565 = sbr.rel (%p563) target = $region52
        $region51: #{tpu_custom_call.1} parent=47 // pred_region
          %s566 = sand.u32 %s138, 1
          %s567 = scalar_lea.sflag [#allocation3], %s566
          %s568 = sand.u32 %s138, 1
          %s569 = smul.addr %s568, 8
          %s570 = scalar_lea.vmem [#allocation2], %s569
          %571 = dma.done %s567, 128
        $region52: #{tpu_custom_call.1} parent=47 // pred_fallthru
          _
      $region48: #{tpu_custom_call.1} parent=5 // pred_fallthru
        _
    $region6: #{tpu_custom_call.1} parent=1 // loop_footer
      %s18 = sadd.s32 1, %s14
    $region7: #{tpu_custom_call.1} parent=1 // loop_footer_branch
      %13 = sbr.rel target = $region3
    $region8: #{tpu_custom_call.1} parent=1 // loop_exit
      _
    %572 = vsyncpa [#allocation3], 1
    %s573 = scalar_lea.sflag [#allocation3], 1
    %574 = vsyncpa %s573, 1

</llo_original>
